<compile_context>
chip_gen: v7x
topology: tpu7x:2x2x1
jax: 0.10.0
libtpu: 0.0.40
codegen_flags: <defaults>
</compile_context>

<pallas_src>
from functools import partial

import jax
import jax.numpy as jnp
from jax.experimental import pallas as pl
from jax.experimental.pallas import tpu as pltpu

DIM = 32
LANES = 128
OUT_WIDTH = 128          # lane-dense packed output width
BN_EPS = 1e-5
B_ROWS = 16              # bias-slab sublane height (>= 11 rows used)

# weight-slab 128-lane block indices
W1A, W1B, W2A, W2B, WFC1, WH, WG2 = range(7)
NUM_WBLOCKS = 7
# bias-slab row indices
B1A, B1B, S1, T1, B2A, B2B, S2, T2, BFC1, BH, BG2 = range(11)


# ---------------------------------------------------------------------------
# Single fused kernel: 2x GIN layer -> global_add_pool -> fc1 -> packed heads
# ---------------------------------------------------------------------------
def ginnet_fused_kernel(a_ref, p_ref, x_ref, w_ref, b_ref, o_ref, *, num_classes):
    f32 = jnp.float32
    a_hat = a_ref[...]                                   # (N, N) bf16, resident once

    def wblk(i):                                         # (128, 128) bf16 weight block
        return w_ref[:, i * LANES:(i + 1) * LANES]

    def brow(i):                                         # (1, 128) f32 bias/scale row
        return b_ref[i:i + 1, :]

    def gin_layer(h, wa, wb, ba, bb, s, t):
        # GINConv (eps=0): MLP(A_hat @ H); BatchNorm1d (eval) folded to scale/shift.
        agg = jnp.dot(a_hat, h, preferred_element_type=f32)
        z = jnp.maximum(jnp.dot(agg, wblk(wa), preferred_element_type=f32) + brow(ba), 0.0)
        z = jnp.maximum(jnp.dot(z, wblk(wb), preferred_element_type=f32) + brow(bb), 0.0)
        return z * brow(s) + brow(t)

    h = gin_layer(x_ref[...], W1A, W1B, B1A, B1B, S1, T1)
    h = gin_layer(h, W2A, W2B, B2A, B2B, S2, T2)

    # global_add_pool as a matmul: P[g, i] = 1 if batch[i] == g
    pooled = jnp.dot(p_ref[...], h, preferred_element_type=f32)              # (G, 128)
    hh = jnp.maximum(
        jnp.dot(pooled, wblk(WFC1), preferred_element_type=f32) + brow(BFC1), 0.0)
    # F.dropout(p=0.5) is the identity in eval mode.

    # Heads, computed entirely in packed 128-lane space (one fused matmul for the
    # two heads that share hh; no tiny matmuls, no placement matrices):
    #   combined cols [0, NC)        = fc2 logits
    #   combined cols [DIM, 2*DIM)   = gender hidden (pre-ReLU)
    combined = jnp.dot(hh, wblk(WH), preferred_element_type=f32) + brow(BH)
    gh = jnp.maximum(combined, 0.0)
    # W_G2 block is nonzero only at rows [DIM, 2*DIM) x cols [NC, NC+2), so the
    # ReLU'd fc2 columns of gh cannot leak into the gender logits.
    gcon = jnp.dot(gh, wblk(WG2), preferred_element_type=f32)

    col = jax.lax.broadcasted_iota(jnp.int32, combined.shape, 1)
    mask_fc2 = col < num_classes
    mask_gen = (col >= num_classes) & (col < num_classes + 2)

    # packed logits: cols [0,NC) = fc2, cols [NC,NC+2) = gender, rest = 0
    logits = jnp.where(mask_fc2, combined, 0.0) + gcon + brow(BG2)

    def masked_log_softmax(z, mask):
        neg = jnp.float32(-1e30)
        m = jnp.max(jnp.where(mask, z, neg), axis=-1, keepdims=True)
        e = jnp.exp(jnp.where(mask, z - m, neg))
        return (z - m) - jnp.log(jnp.sum(e, axis=-1, keepdims=True))

    ls_fc2 = masked_log_softmax(logits, mask_fc2)
    ls_gen = masked_log_softmax(logits, mask_gen)
    # Age head: log_softmax over a size-1 last dim is identically 0, so its
    # column (NC+2) — and every other unused column — is explicitly written 0.
    o_ref[...] = jnp.where(mask_fc2, ls_fc2, jnp.where(mask_gen, ls_gen, 0.0))


# ---------------------------------------------------------------------------
# Wrapper: full GINNet forward (jitted; one pallas_call, 5 packed inputs)
# ---------------------------------------------------------------------------
def _round_up(v, m):
    return (v + m - 1) // m * m


@partial(jax.jit, static_argnums=(3,))
def ginnet_forward(x, edge_index, batch, num_graphs, params):
    n, nf = x.shape
    num_classes = params["wfc2"].shape[1]
    assert nf <= DIM, "num_features must fit the DIM-row weight blocks"
    assert num_classes + 2 <= DIM and num_classes + 3 <= OUT_WIDTH

    n_pad = _round_up(n, 8)
    g_pad = _round_up(num_graphs, 8)

    src, dst = edge_index[0], edge_index[1]
    # dense adjacency (messages flow src -> dst) plus (1+eps)*I with eps=0
    a_hat = (jnp.zeros((n_pad, n_pad), jnp.float32).at[dst, src].add(1.0)
             + jnp.eye(n_pad, dtype=jnp.float32))
    pool_mat = jnp.zeros((g_pad, n_pad), jnp.float32).at[batch, jnp.arange(n)].set(1.0)
    x_pad = jnp.zeros((n_pad, LANES), jnp.float32).at[:n, :nf].set(x)

    # Fold eval-mode BatchNorm1d into a single affine (scale, shift).
    def fold_bn(gamma, beta, mean, var):
        s = gamma / jnp.sqrt(var + BN_EPS)
        return s, beta - mean * s

    s1, t1 = fold_bn(params["gamma1"], params["beta1"], params["mean1"], params["var1"])
    s2, t2 = fold_bn(params["gamma2"], params["beta2"], params["mean2"], params["var2"])

    # ---- pack all matmul weights into one (128, 7*128) bf16 slab ----
    def wpad(wmat):
        return (jnp.zeros((LANES, LANES), jnp.float32)
                .at[:wmat.shape[0], :wmat.shape[1]].set(wmat))

    w_head = (jnp.zeros((DIM, LANES), jnp.float32)
              .at[:, :num_classes].set(params["wfc2"])
              .at[:, DIM:2 * DIM].set(params["wg1"]))
    w_gen2 = (jnp.zeros((LANES, LANES), jnp.float32)
              .at[DIM:2 * DIM, num_classes:num_classes + 2].set(params["wg2"]))

    w_slab = jnp.concatenate(
        [wpad(params["w1a"]), wpad(params["w1b"]), wpad(params["w2a"]),
         wpad(params["w2b"]), wpad(params["wfc1"]), wpad(w_head), wpad(w_gen2)],
        axis=1).astype(jnp.bfloat16)

    # ---- pack all biases / BN scale+shift into one (16, 128) f32 slab ----
    def rpad(vec):
        v = vec.reshape(-1)
        return jnp.zeros((LANES,), jnp.float32).at[:v.shape[0]].set(v)

    b_head = (jnp.zeros((LANES,), jnp.float32)
              .at[:num_classes].set(params["bfc2"].reshape(-1))
              .at[DIM:2 * DIM].set(params["bg1"].reshape(-1)))
    b_gen2 = (jnp.zeros((LANES,), jnp.float32)
              .at[num_classes:num_classes + 2].set(params["bg2"].reshape(-1)))

    rows = [rpad(params["b1a"]), rpad(params["b1b"]), rpad(s1), rpad(t1),
            rpad(params["b2a"]), rpad(params["b2b"]), rpad(s2), rpad(t2),
            rpad(params["bfc1"]), b_head, b_gen2]
    b_slab = jnp.zeros((B_ROWS, LANES), jnp.float32).at[:len(rows)].set(jnp.stack(rows))

    args = (a_hat.astype(jnp.bfloat16), pool_mat, x_pad.astype(jnp.bfloat16),
            w_slab, b_slab)

    flops = 2 * (2 * n_pad * n_pad * LANES          # two A_hat aggregations
                 + 4 * n_pad * LANES * LANES        # four GIN-MLP matmuls
                 + g_pad * n_pad * LANES            # pooling
                 + 3 * g_pad * LANES * LANES)       # fc1 + fused heads
    bytes_accessed = (n_pad * n_pad * 2 + g_pad * n_pad * 4 + n_pad * LANES * 2
                      + LANES * NUM_WBLOCKS * LANES * 2 + B_ROWS * LANES * 4
                      + g_pad * OUT_WIDTH * 4)

    packed = pl.pallas_call(
        partial(ginnet_fused_kernel, num_classes=num_classes),
        out_shape=jax.ShapeDtypeStruct((g_pad, OUT_WIDTH), jnp.float32),
        in_specs=[pl.BlockSpec(memory_space=pltpu.MemorySpace.VMEM)] * len(args),
        out_specs=pl.BlockSpec(memory_space=pltpu.MemorySpace.VMEM),
        cost_estimate=pl.CostEstimate(
            flops=flops,
            transcendentals=g_pad * (2 * OUT_WIDTH + 4),
            bytes_accessed=bytes_accessed),
    )(*args)

    out0 = packed[:num_graphs, :num_classes]
    out1 = packed[:num_graphs, num_classes:num_classes + 2]
    out2 = packed[:num_graphs, num_classes + 2:num_classes + 3]
    return out0, out1, out2


# ---------------------------------------------------------------------------
# Pure-JAX f32 reference (un-fused, computes the age head explicitly)
# ---------------------------------------------------------------------------
def ginnet_reference(x, edge_index, batch, num_graphs, p):
    n = x.shape[0]
    src, dst = edge_index[0], edge_index[1]
    a_hat = (jnp.zeros((n, n), jnp.float32).at[dst, src].add(1.0)
             + jnp.eye(n, dtype=jnp.float32))
    pool_mat = jax.nn.one_hot(batch, num_graphs, dtype=jnp.float32).T

    def layer(a, xx, w1, b1, w2, b2, gm, bt, mu, var):
        h = a @ xx
        h = jnp.maximum(h @ w1 + b1, 0.0)
        h = jnp.maximum(h @ w2 + b2, 0.0)
        return (h - mu) / jnp.sqrt(var + BN_EPS) * gm + bt

    h = layer(a_hat, x, p["w1a"], p["b1a"], p["w1b"], p["b1b"],
              p["gamma1"], p["beta1"], p["mean1"], p["var1"])
    h = layer(a_hat, h, p["w2a"], p["b2a"], p["w2b"], p["b2b"],
              p["gamma2"], p["beta2"], p["mean2"], p["var2"])
    pooled = pool_mat @ h
    hh = jnp.maximum(pooled @ p["wfc1"] + p["bfc1"], 0.0)
    x0 = hh @ p["wfc2"] + p["bfc2"]
    x1 = jnp.maximum(hh @ p["wg1"] + p["bg1"], 0.0) @ p["wg2"] + p["bg2"]
    x2 = jax.nn.sigmoid(jnp.maximum(hh @ p["wa1"] + p["ba1"], 0.0) @ p["wa2"] + p["ba2"])
    ls = jax.nn.log_softmax
    return ls(x0, axis=-1), ls(x1, axis=-1), ls(x2, axis=-1)


if __name__ == "__main__":
    num_features = 16
    num_classes = 3
    num_nodes = 8
    num_graphs = 2

    key = jax.random.PRNGKey(0)
    keys = iter(jax.random.split(key, 48))

    def lin(fin, fout):
        w = jax.random.normal(next(keys), (fin, fout), jnp.float32) * 0.1
        b = jax.random.normal(next(keys), (1, fout), jnp.float32) * 0.1
        return w, b

    params = {}
    # conv1 MLP + bn1 (nontrivial running stats, as in a trained checkpoint)
    params["w1a"], params["b1a"] = lin(num_features, DIM)
    params["w1b"], params["b1b"] = lin(DIM, DIM)
    params["gamma1"] = jax.random.normal(next(keys), (1, DIM), jnp.float32) * 0.1 + 1.0
    params["beta1"] = jax.random.normal(next(keys), (1, DIM), jnp.float32) * 0.1
    params["mean1"] = jax.random.normal(next(keys), (1, DIM), jnp.float32) * 0.05
    params["var1"] = jnp.abs(jax.random.normal(next(keys), (1, DIM), jnp.float32)) * 0.2 + 0.8
    # conv2 MLP + bn2
    params["w2a"], params["b2a"] = lin(DIM, DIM)
    params["w2b"], params["b2b"] = lin(DIM, DIM)
    params["gamma2"] = jax.random.normal(next(keys), (1, DIM), jnp.float32) * 0.1 + 1.0
    params["beta2"] = jax.random.normal(next(keys), (1, DIM), jnp.float32) * 0.1
    params["mean2"] = jax.random.normal(next(keys), (1, DIM), jnp.float32) * 0.05
    params["var2"] = jnp.abs(jax.random.normal(next(keys), (1, DIM), jnp.float32)) * 0.2 + 0.8
    # heads
    params["wfc1"], params["bfc1"] = lin(DIM, DIM)
    params["wfc2"], params["bfc2"] = lin(DIM, num_classes)
    params["wg1"], params["bg1"] = lin(DIM, DIM)
    params["wg2"], params["bg2"] = lin(DIM, 2)
    params["wa1"], params["ba1"] = lin(DIM, DIM)   # used only by the reference:
    params["wa2"], params["ba2"] = lin(DIM, 1)     # age head is dead compute in fwd

    # node features, edges (src -> dst), graph assignment
    x = jax.random.normal(next(keys), (num_nodes, num_features), jnp.float32)
    edge_index = jnp.array(
        [[0, 1, 2, 3, 4, 5, 6, 7, 1, 3],
         [1, 2, 3, 0, 5, 6, 7, 4, 0, 2]], dtype=jnp.int32)
    batch = jnp.array([0, 0, 0, 0, 1, 1, 1, 1], dtype=jnp.int32)

    outs = ginnet_forward(x, edge_index, batch, num_graphs, params)
    outs = jax.block_until_ready(outs)

    refs = ginnet_reference(x, edge_index, batch, num_graphs, params)
    for o, r in zip(outs, refs):
        assert o.shape == r.shape
        # bf16-rounded inputs/weights vs f32 reference -> slightly looser tol
        assert jnp.allclose(o, r, atol=2e-2, rtol=2e-2), (o, r)

    print("KERNEL_OK")
</pallas_src>

<mosaic_0001>
module attributes {stable_mosaic.version = 11 : i64} {
  func.func @ginnet_fused_kernel(%arg0: memref<8x8xbf16, #tpu.memory_space<vmem>>, %arg1: memref<8x8xf32, #tpu.memory_space<vmem>>, %arg2: memref<8x128xbf16, #tpu.memory_space<vmem>>, %arg3: memref<128x896xbf16, #tpu.memory_space<vmem>>, %arg4: memref<16x128xf32, #tpu.memory_space<vmem>>, %arg5: memref<8x128xf32, #tpu.memory_space<vmem>>) attributes {dimension_semantics = [], scalar_prefetch = 0 : i64, scratch_operands = 0 : i64, tpu.core_type = #tpu.core_type<tc>} {
    %c0 = arith.constant 0 : index
    %c0_0 = arith.constant 0 : index
    %0 = vector.load %arg0[%c0, %c0_0] : memref<8x8xbf16, #tpu.memory_space<vmem>>, vector<8x8xbf16>
    %c0_1 = arith.constant 0 : index
    %c0_2 = arith.constant 0 : index
    %1 = vector.load %arg2[%c0_1, %c0_2] : memref<8x128xbf16, #tpu.memory_space<vmem>>, vector<8x128xbf16>
    %cst = arith.constant dense<0.000000e+00> : vector<8x128xf32>
    %2 = tpu.matmul %0, %1, %cst {dimension_numbers = #tpu.dot_dimension_numbers<[1], [0], [0], [1], [0, 0, 1, 1], [], []>} : vector<8x8xbf16>, vector<8x128xbf16>, vector<8x128xf32> -> vector<8x128xf32>
    %c0_3 = arith.constant 0 : index
    %c0_4 = arith.constant 0 : index
    %3 = vector.load %arg3[%c0_3, %c0_4] : memref<128x896xbf16, #tpu.memory_space<vmem>>, vector<128x128xbf16>
    %cst_5 = arith.constant dense<0.000000e+00> : vector<8x128xf32>
    %4 = tpu.matmul %2, %3, %cst_5 {dimension_numbers = #tpu.dot_dimension_numbers<[1], [0], [0], [1], [0, 0, 1, 1], [], []>} : vector<8x128xf32>, vector<128x128xbf16>, vector<8x128xf32> -> vector<8x128xf32>
    %c0_6 = arith.constant 0 : index
    %c0_7 = arith.constant 0 : index
    %5 = vector.load %arg4[%c0_6, %c0_7] : memref<16x128xf32, #tpu.memory_space<vmem>>, vector<1x128xf32>
    %6 = vector.broadcast %5 : vector<1x128xf32> to vector<8x128xf32>
    %7 = arith.addf %4, %6 : vector<8x128xf32>
    %cst_8 = arith.constant 0.000000e+00 : f32
    %8 = vector.broadcast %cst_8 : f32 to vector<8x128xf32>
    %9 = arith.maximumf %7, %8 : vector<8x128xf32>
    %c0_9 = arith.constant 0 : index
    %c128 = arith.constant 128 : index
    %10 = vector.load %arg3[%c0_9, %c128] : memref<128x896xbf16, #tpu.memory_space<vmem>>, vector<128x128xbf16>
    %cst_10 = arith.constant dense<0.000000e+00> : vector<8x128xf32>
    %11 = tpu.matmul %9, %10, %cst_10 {dimension_numbers = #tpu.dot_dimension_numbers<[1], [0], [0], [1], [0, 0, 1, 1], [], []>} : vector<8x128xf32>, vector<128x128xbf16>, vector<8x128xf32> -> vector<8x128xf32>
    %c1 = arith.constant 1 : index
    %c0_11 = arith.constant 0 : index
    %12 = vector.load %arg4[%c1, %c0_11] : memref<16x128xf32, #tpu.memory_space<vmem>>, vector<1x128xf32>
    %13 = vector.broadcast %12 : vector<1x128xf32> to vector<8x128xf32>
    %14 = arith.addf %11, %13 : vector<8x128xf32>
    %cst_12 = arith.constant 0.000000e+00 : f32
    %15 = vector.broadcast %cst_12 : f32 to vector<8x128xf32>
    %16 = arith.maximumf %14, %15 : vector<8x128xf32>
    %c2 = arith.constant 2 : index
    %c0_13 = arith.constant 0 : index
    %17 = vector.load %arg4[%c2, %c0_13] : memref<16x128xf32, #tpu.memory_space<vmem>>, vector<1x128xf32>
    %18 = vector.broadcast %17 : vector<1x128xf32> to vector<8x128xf32>
    %19 = arith.mulf %16, %18 : vector<8x128xf32>
    %c3 = arith.constant 3 : index
    %c0_14 = arith.constant 0 : index
    %20 = vector.load %arg4[%c3, %c0_14] : memref<16x128xf32, #tpu.memory_space<vmem>>, vector<1x128xf32>
    %21 = vector.broadcast %20 : vector<1x128xf32> to vector<8x128xf32>
    %22 = arith.addf %19, %21 : vector<8x128xf32>
    %cst_15 = arith.constant dense<0.000000e+00> : vector<8x128xf32>
    %23 = tpu.matmul %0, %22, %cst_15 {dimension_numbers = #tpu.dot_dimension_numbers<[1], [0], [0], [1], [0, 0, 1, 1], [], []>} : vector<8x8xbf16>, vector<8x128xf32>, vector<8x128xf32> -> vector<8x128xf32>
    %c0_16 = arith.constant 0 : index
    %c256 = arith.constant 256 : index
    %24 = vector.load %arg3[%c0_16, %c256] : memref<128x896xbf16, #tpu.memory_space<vmem>>, vector<128x128xbf16>
    %cst_17 = arith.constant dense<0.000000e+00> : vector<8x128xf32>
    %25 = tpu.matmul %23, %24, %cst_17 {dimension_numbers = #tpu.dot_dimension_numbers<[1], [0], [0], [1], [0, 0, 1, 1], [], []>} : vector<8x128xf32>, vector<128x128xbf16>, vector<8x128xf32> -> vector<8x128xf32>
    %c4 = arith.constant 4 : index
    %c0_18 = arith.constant 0 : index
    %26 = vector.load %arg4[%c4, %c0_18] : memref<16x128xf32, #tpu.memory_space<vmem>>, vector<1x128xf32>
    %27 = vector.broadcast %26 : vector<1x128xf32> to vector<8x128xf32>
    %28 = arith.addf %25, %27 : vector<8x128xf32>
    %cst_19 = arith.constant 0.000000e+00 : f32
    %29 = vector.broadcast %cst_19 : f32 to vector<8x128xf32>
    %30 = arith.maximumf %28, %29 : vector<8x128xf32>
    %c0_20 = arith.constant 0 : index
    %c384 = arith.constant 384 : index
    %31 = vector.load %arg3[%c0_20, %c384] : memref<128x896xbf16, #tpu.memory_space<vmem>>, vector<128x128xbf16>
    %cst_21 = arith.constant dense<0.000000e+00> : vector<8x128xf32>
    %32 = tpu.matmul %30, %31, %cst_21 {dimension_numbers = #tpu.dot_dimension_numbers<[1], [0], [0], [1], [0, 0, 1, 1], [], []>} : vector<8x128xf32>, vector<128x128xbf16>, vector<8x128xf32> -> vector<8x128xf32>
    %c5 = arith.constant 5 : index
    %c0_22 = arith.constant 0 : index
    %33 = vector.load %arg4[%c5, %c0_22] : memref<16x128xf32, #tpu.memory_space<vmem>>, vector<1x128xf32>
    %34 = vector.broadcast %33 : vector<1x128xf32> to vector<8x128xf32>
    %35 = arith.addf %32, %34 : vector<8x128xf32>
    %cst_23 = arith.constant 0.000000e+00 : f32
    %36 = vector.broadcast %cst_23 : f32 to vector<8x128xf32>
    %37 = arith.maximumf %35, %36 : vector<8x128xf32>
    %c6 = arith.constant 6 : index
    %c0_24 = arith.constant 0 : index
    %38 = vector.load %arg4[%c6, %c0_24] : memref<16x128xf32, #tpu.memory_space<vmem>>, vector<1x128xf32>
    %39 = vector.broadcast %38 : vector<1x128xf32> to vector<8x128xf32>
    %40 = arith.mulf %37, %39 : vector<8x128xf32>
    %c7 = arith.constant 7 : index
    %c0_25 = arith.constant 0 : index
    %41 = vector.load %arg4[%c7, %c0_25] : memref<16x128xf32, #tpu.memory_space<vmem>>, vector<1x128xf32>
    %42 = vector.broadcast %41 : vector<1x128xf32> to vector<8x128xf32>
    %43 = arith.addf %40, %42 : vector<8x128xf32>
    %c0_26 = arith.constant 0 : index
    %c0_27 = arith.constant 0 : index
    %44 = vector.load %arg1[%c0_26, %c0_27] : memref<8x8xf32, #tpu.memory_space<vmem>>, vector<8x8xf32>
    %cst_28 = arith.constant dense<0.000000e+00> : vector<8x128xf32>
    %45 = tpu.matmul %44, %43, %cst_28 {dimension_numbers = #tpu.dot_dimension_numbers<[1], [0], [0], [1], [0, 0, 1, 1], [], []>} : vector<8x8xf32>, vector<8x128xf32>, vector<8x128xf32> -> vector<8x128xf32>
    %c0_29 = arith.constant 0 : index
    %c512 = arith.constant 512 : index
    %46 = vector.load %arg3[%c0_29, %c512] : memref<128x896xbf16, #tpu.memory_space<vmem>>, vector<128x128xbf16>
    %cst_30 = arith.constant dense<0.000000e+00> : vector<8x128xf32>
    %47 = tpu.matmul %45, %46, %cst_30 {dimension_numbers = #tpu.dot_dimension_numbers<[1], [0], [0], [1], [0, 0, 1, 1], [], []>} : vector<8x128xf32>, vector<128x128xbf16>, vector<8x128xf32> -> vector<8x128xf32>
    %c8 = arith.constant 8 : index
    %c0_31 = arith.constant 0 : index
    %48 = vector.load %arg4[%c8, %c0_31] : memref<16x128xf32, #tpu.memory_space<vmem>>, vector<1x128xf32>
    %49 = vector.broadcast %48 : vector<1x128xf32> to vector<8x128xf32>
    %50 = arith.addf %47, %49 : vector<8x128xf32>
    %cst_32 = arith.constant 0.000000e+00 : f32
    %51 = vector.broadcast %cst_32 : f32 to vector<8x128xf32>
    %52 = arith.maximumf %50, %51 : vector<8x128xf32>
    %c0_33 = arith.constant 0 : index
    %c640 = arith.constant 640 : index
    %53 = vector.load %arg3[%c0_33, %c640] : memref<128x896xbf16, #tpu.memory_space<vmem>>, vector<128x128xbf16>
    %cst_34 = arith.constant dense<0.000000e+00> : vector<8x128xf32>
    %54 = tpu.matmul %52, %53, %cst_34 {dimension_numbers = #tpu.dot_dimension_numbers<[1], [0], [0], [1], [0, 0, 1, 1], [], []>} : vector<8x128xf32>, vector<128x128xbf16>, vector<8x128xf32> -> vector<8x128xf32>
    %c9 = arith.constant 9 : index
    %c0_35 = arith.constant 0 : index
    %55 = vector.load %arg4[%c9, %c0_35] : memref<16x128xf32, #tpu.memory_space<vmem>>, vector<1x128xf32>
    %56 = vector.broadcast %55 : vector<1x128xf32> to vector<8x128xf32>
    %57 = arith.addf %54, %56 : vector<8x128xf32>
    %cst_36 = arith.constant 0.000000e+00 : f32
    %58 = vector.broadcast %cst_36 : f32 to vector<8x128xf32>
    %59 = arith.maximumf %57, %58 : vector<8x128xf32>
    %c0_37 = arith.constant 0 : index
    %c768 = arith.constant 768 : index
    %60 = vector.load %arg3[%c0_37, %c768] : memref<128x896xbf16, #tpu.memory_space<vmem>>, vector<128x128xbf16>
    %cst_38 = arith.constant dense<0.000000e+00> : vector<8x128xf32>
    %61 = tpu.matmul %59, %60, %cst_38 {dimension_numbers = #tpu.dot_dimension_numbers<[1], [0], [0], [1], [0, 0, 1, 1], [], []>} : vector<8x128xf32>, vector<128x128xbf16>, vector<8x128xf32> -> vector<8x128xf32>
    %62 = tpu.iota {dimensions = array<i32: 1>} : vector<8x128xi32>
    %c3_i32 = arith.constant 3 : i32
    %63 = vector.broadcast %c3_i32 : i32 to vector<8x128xi32>
    %64 = arith.cmpi slt, %62, %63 : vector<8x128xi32>
    %c3_i32_39 = arith.constant 3 : i32
    %65 = vector.broadcast %c3_i32_39 : i32 to vector<8x128xi32>
    %66 = arith.cmpi sge, %62, %65 : vector<8x128xi32>
    %c5_i32 = arith.constant 5 : i32
    %67 = vector.broadcast %c5_i32 : i32 to vector<8x128xi32>
    %68 = arith.cmpi slt, %62, %67 : vector<8x128xi32>
    %69 = arith.andi %66, %68 : vector<8x128xi1>
    %cst_40 = arith.constant 0.000000e+00 : f32
    %70 = vector.broadcast %cst_40 : f32 to vector<8x128xf32>
    %71 = arith.select %64, %57, %70 : vector<8x128xi1>, vector<8x128xf32>
    %72 = arith.addf %71, %61 : vector<8x128xf32>
    %c10 = arith.constant 10 : index
    %c0_41 = arith.constant 0 : index
    %73 = vector.load %arg4[%c10, %c0_41] : memref<16x128xf32, #tpu.memory_space<vmem>>, vector<1x128xf32>
    %74 = vector.broadcast %73 : vector<1x128xf32> to vector<8x128xf32>
    %75 = arith.addf %72, %74 : vector<8x128xf32>
    %cst_42 = arith.constant -1.000000e+30 : f32
    %76 = vector.broadcast %cst_42 : f32 to vector<8x128xf32>
    %77 = arith.select %64, %75, %76 : vector<8x128xi1>, vector<8x128xf32>
    %cst_43 = arith.constant dense<0xFF800000> : vector<8xf32>
    %78 = vector.multi_reduction <maximumf>, %77, %cst_43 [1] : vector<8x128xf32> to vector<8xf32>
    %79 = vector.shape_cast %78 : vector<8xf32> to vector<8x1xf32>
    %80 = vector.broadcast %79 : vector<8x1xf32> to vector<8x128xf32>
    %81 = arith.subf %75, %80 : vector<8x128xf32>
    %cst_44 = arith.constant -1.000000e+30 : f32
    %82 = vector.broadcast %cst_44 : f32 to vector<8x128xf32>
    %83 = arith.select %64, %81, %82 : vector<8x128xi1>, vector<8x128xf32>
    %84 = math.exp %83 : vector<8x128xf32>
    %85 = vector.broadcast %79 : vector<8x1xf32> to vector<8x128xf32>
    %86 = arith.subf %75, %85 : vector<8x128xf32>
    %cst_45 = arith.constant dense<0.000000e+00> : vector<8xf32>
    %87 = vector.multi_reduction <add>, %84, %cst_45 [1] : vector<8x128xf32> to vector<8xf32>
    %88 = vector.shape_cast %87 : vector<8xf32> to vector<8x1xf32>
    %89 = math.log %88 : vector<8x1xf32>
    %90 = vector.broadcast %89 : vector<8x1xf32> to vector<8x128xf32>
    %91 = arith.subf %86, %90 : vector<8x128xf32>
    %cst_46 = arith.constant -1.000000e+30 : f32
    %92 = vector.broadcast %cst_46 : f32 to vector<8x128xf32>
    %93 = arith.select %69, %75, %92 : vector<8x128xi1>, vector<8x128xf32>
    %cst_47 = arith.constant dense<0xFF800000> : vector<8xf32>
    %94 = vector.multi_reduction <maximumf>, %93, %cst_47 [1] : vector<8x128xf32> to vector<8xf32>
    %95 = vector.shape_cast %94 : vector<8xf32> to vector<8x1xf32>
    %96 = vector.broadcast %95 : vector<8x1xf32> to vector<8x128xf32>
    %97 = arith.subf %75, %96 : vector<8x128xf32>
    %cst_48 = arith.constant -1.000000e+30 : f32
    %98 = vector.broadcast %cst_48 : f32 to vector<8x128xf32>
    %99 = arith.select %69, %97, %98 : vector<8x128xi1>, vector<8x128xf32>
    %100 = math.exp %99 : vector<8x128xf32>
    %101 = vector.broadcast %95 : vector<8x1xf32> to vector<8x128xf32>
    %102 = arith.subf %75, %101 : vector<8x128xf32>
    %cst_49 = arith.constant dense<0.000000e+00> : vector<8xf32>
    %103 = vector.multi_reduction <add>, %100, %cst_49 [1] : vector<8x128xf32> to vector<8xf32>
    %104 = vector.shape_cast %103 : vector<8xf32> to vector<8x1xf32>
    %105 = math.log %104 : vector<8x1xf32>
    %106 = vector.broadcast %105 : vector<8x1xf32> to vector<8x128xf32>
    %107 = arith.subf %102, %106 : vector<8x128xf32>
    %cst_50 = arith.constant 0.000000e+00 : f32
    %108 = vector.broadcast %cst_50 : f32 to vector<8x128xf32>
    %109 = arith.select %69, %107, %108 : vector<8x128xi1>, vector<8x128xf32>
    %110 = arith.select %64, %91, %109 : vector<8x128xi1>, vector<8x128xf32>
    %c0_51 = arith.constant 0 : index
    %c0_52 = arith.constant 0 : index
    %111 = vector.load %arg5[%c0_51, %c0_52] : memref<8x128xf32, #tpu.memory_space<vmem>>, vector<8x128xf32>
    tpu.vector_store %arg5[%c0_51, %c0_52], %110 {strides = array<i32>} : memref<8x128xf32, #tpu.memory_space<vmem>>, vector<8x128xf32>,
    return
  }
}

</mosaic_0001>

<llo_original>
// kernel: ginnet_forward.1
$region0: #{ginnet_forward.1}
  #allocation0 [shape = 'u32[]', space=smem, size = 0x4, offset = 0x4, fixed_abs, tag = 'smem constant byte address 0x4 - core index']
  #allocation1 [shape = 'u32[144,128]{1,0:T(1,128)}', space=vmem, size = 0x12000, scoped, tag = 'internal scratch']
  %s0 = inlined_call_operand.vmem [shape: bf16[8,8], index: 0, kind: input, shape index: {}]
  %s1 = inlined_call_operand.vmem [shape: f32[8,8], index: 1, kind: input, shape index: {}]
  %s2 = inlined_call_operand.vmem [shape: bf16[8,128], index: 2, kind: input, shape index: {}]
  %s3 = inlined_call_operand.vmem [shape: bf16[128,896], index: 3, kind: input, shape index: {}]
  %s4 = inlined_call_operand.vmem [shape: f32[16,128], index: 4, kind: input, shape index: {}]
  %s5 = inlined_call_operand.vmem [shape: f32[8,128], index: 5, kind: output, shape index: {}]
  %s6 = sld [smem:[#allocation0]]
  $region30: #{ginnet_forward.1} parent=0
    _
  %s8 = ssub.s32 1, %s6
  %s9 = scalar_select 0, %s8, %s6
  // Predicated region
  $region2: #{ginnet_forward.1} parent=0 // pred_check
    _
  $region3: #{ginnet_forward.1} parent=0 // pred_check_branch
    %11 = sbr.rel (0) target = $region5
  $region4: #{ginnet_forward.1} parent=0 // pred_region
    _
  $region5: #{ginnet_forward.1} parent=0 // pred_fallthru
    _
  // Predicated region
  $region6: #{ginnet_forward.1} parent=0 // pred_check
    _
  $region7: #{ginnet_forward.1} parent=0 // pred_check_branch
    %13 = sbr.rel (0) target = $region9
  $region8: #{ginnet_forward.1} parent=0 // pred_region
    _
  $region9: #{ginnet_forward.1} parent=0 // pred_fallthru
    _
  // Predicated region
  $region10: #{ginnet_forward.1} parent=0 // pred_check
    _
  $region11: #{ginnet_forward.1} parent=0 // pred_check_branch
    %15 = sbr.rel (0) target = $region13
  $region12: #{ginnet_forward.1} parent=0 // pred_region
    _
  $region13: #{ginnet_forward.1} parent=0 // pred_fallthru
    _
  // Predicated region
  $region14: #{ginnet_forward.1} parent=0 // pred_check
    _
  $region15: #{ginnet_forward.1} parent=0 // pred_check_branch
    %17 = sbr.rel (0) target = $region17
  $region16: #{ginnet_forward.1} parent=0 // pred_region
    _
  $region17: #{ginnet_forward.1} parent=0 // pred_fallthru
    _
  // Predicated region
  $region18: #{ginnet_forward.1} parent=0 // pred_check
    _
  $region19: #{ginnet_forward.1} parent=0 // pred_check_branch
    %19 = sbr.rel (0) target = $region21
  $region20: #{ginnet_forward.1} parent=0 // pred_region
    _
  $region21: #{ginnet_forward.1} parent=0 // pred_fallthru
    _
  %v21 = vld [vmem:[%s0] sm:$0xf]
  %v22 = vld [vmem:[%s2] sm:$0xf]
  %vm23 = vcmask 64512
  %v25 = vsel %vm23, %v21, 0
  %vm27 = vcmask 1043456
  %v29 = vsel %vm27, %v22, 0
  %31 = vmatprep.subr.bf16.mxu0 0
  %32 = vmatpush1.bf16.msra.mxu0 %v29
  %33 = vmatprep.subr.bf16.mxu0 0
  %34 = vmatpush1.bf16.msra.mxu0 0
  %35 = vmatprep.subr.bf16.mxu0 0
  %36 = vmatpush1.bf16.msra.mxu0 0
  %37 = vmatprep.subr.bf16.mxu0 0
  %38 = vmatpush1.bf16.msra.mxu0 0
  %39 = vmatprep.subr.bf16.mxu0 0
  %40 = vmatpush1.bf16.msra.mxu0 0
  %41 = vmatprep.subr.bf16.mxu0 0
  %42 = vmatpush1.bf16.msra.mxu0 0
  %43 = vmatprep.subr.bf16.mxu0 0
  %44 = vmatpush1.bf16.msra.mxu0 0
  %45 = vmatprep.subr.bf16.mxu0 0
  %46 = vmatpush1.bf16.msra.mxu0 0
  %47 = vmatprep.subr.bf16.mxu0 0
  %48 = vmatpush1.bf16.msra.mxu0 0
  %49 = vmatprep.subr.bf16.mxu0 0
  %50 = vmatpush1.bf16.msra.mxu0 0
  %51 = vmatprep.subr.bf16.mxu0 0
  %52 = vmatpush1.bf16.msra.mxu0 0
  %53 = vmatprep.subr.bf16.mxu0 0
  %54 = vmatpush1.bf16.msra.mxu0 0
  %55 = vmatprep.subr.bf16.mxu0 0
  %56 = vmatpush1.bf16.msra.mxu0 0
  %57 = vmatprep.subr.bf16.mxu0 0
  %58 = vmatpush1.bf16.msra.mxu0 0
  %59 = vmatprep.subr.bf16.mxu0 0
  %60 = vmatpush1.bf16.msra.mxu0 0
  %61 = vmatprep.subr.bf16.mxu0 0
  %62 = vmatpush1.bf16.msra.mxu0 0
  %63 = vmatprep.mubr.bf16.mxu0 0
  %64 = vmatmul.mubr.bf16.gmra.mrb[0].mxu0 %v25
  %v65 = vpop.f32.mrb[0].mxu0
  %v66 = vadd.f32 0.0, %v65
  %v67 = vpop.f32.mrb[0].mxu0
  %v68 = vpop.f32.mrb[0].mxu0
  %v69 = vpop.f32.mrb[0].mxu0
  %70 = vdwg.mxu0
  %v71 = vld [vmem:[%s3] sm:$0xf]
  %v72 = vld [vmem:[%s3 + $0x1c] sm:$0xf]
  %v73 = vld [vmem:[%s3 + $0x38] sm:$0xf]
  %v74 = vld [vmem:[%s3 + $0x54] sm:$0xf]
  %v75 = vld [vmem:[%s3 + $0x70] sm:$0xf]
  %v76 = vld [vmem:[%s3 + $0x8c] sm:$0xf]
  %v77 = vld [vmem:[%s3 + $0xa8] sm:$0xf]
  %v78 = vld [vmem:[%s3 + $0xc4] sm:$0xf]
  %v79 = vld [vmem:[%s3 + $0xe0] sm:$0xf]
  %v80 = vld [vmem:[%s3 + $0xfc] sm:$0xf]
  %v81 = vld [vmem:[%s3 + $0x118] sm:$0xf]
  %v82 = vld [vmem:[%s3 + $0x134] sm:$0xf]
  %v83 = vld [vmem:[%s3 + $0x150] sm:$0xf]
  %v84 = vld [vmem:[%s3 + $0x16c] sm:$0xf]
  %v85 = vld [vmem:[%s3 + $0x188] sm:$0xf]
  %v86 = vld [vmem:[%s3 + $0x1a4] sm:$0xf]
  %v87 = vld [vmem:[%s4] sm:$0x1]
  %v88 = vlaneseq
  %v89 = vshrl.u32 %v88, 7
  %v90 = vsub.s32 0, %v89
  %v91 = vrot.slane %v87, %v90
  %v108 = vunpack.c.l.b16 %v71
  %v109 = vunpack.c.l.b16 %v72
  %v110 = vunpack.c.l.b16 %v73
  %v111 = vunpack.c.l.b16 %v74
  %v112 = vunpack.c.l.b16 %v75
  %v113 = vunpack.c.l.b16 %v76
  %v114 = vunpack.c.l.b16 %v77
  %v115 = vunpack.c.l.b16 %v78
  %v116 = vunpack.c.l.b16 %v79
  %v117 = vunpack.c.l.b16 %v80
  %v118 = vunpack.c.l.b16 %v81
  %v119 = vunpack.c.l.b16 %v82
  %v120 = vunpack.c.l.b16 %v83
  %v121 = vunpack.c.l.b16 %v84
  %v122 = vunpack.c.l.b16 %v85
  %v123 = vunpack.c.l.b16 %v86
  %v124 = vpack.c.b16 %v109, %v108
  %v125 = vpack.c.b16 %v111, %v110
  %v126 = vpack.c.b16 %v113, %v112
  %v127 = vpack.c.b16 %v115, %v114
  %v128 = vpack.c.b16 %v117, %v116
  %v129 = vpack.c.b16 %v119, %v118
  %v130 = vpack.c.b16 %v121, %v120
  %v131 = vpack.c.b16 %v123, %v122
  %140 = vmatprep.subr.bf16.mxu0 0
  %141 = vmatpush1.bf16.msra.mxu0 %v124
  %142 = vmatprep.subr.bf16.mxu0 0
  %143 = vmatpush1.bf16.msra.mxu0 %v125
  %144 = vmatprep.subr.bf16.mxu0 0
  %145 = vmatpush1.bf16.msra.mxu0 %v126
  %146 = vmatprep.subr.bf16.mxu0 0
  %147 = vmatpush1.bf16.msra.mxu0 %v127
  %148 = vmatprep.subr.bf16.mxu0 0
  %149 = vmatpush1.bf16.msra.mxu0 %v128
  %150 = vmatprep.subr.bf16.mxu0 0
  %151 = vmatpush1.bf16.msra.mxu0 %v129
  %152 = vmatprep.subr.bf16.mxu0 0
  %153 = vmatpush1.bf16.msra.mxu0 %v130
  %154 = vmatprep.subr.bf16.mxu0 0
  %155 = vmatpush1.bf16.msra.mxu0 %v131
  %156 = vmatprep.subr.bf16.mxu0 0
  %157 = vmatpush1.bf16.msra.mxu0 0
  %158 = vmatprep.subr.bf16.mxu0 0
  %159 = vmatpush1.bf16.msra.mxu0 0
  %160 = vmatprep.subr.bf16.mxu0 0
  %161 = vmatpush1.bf16.msra.mxu0 0
  %162 = vmatprep.subr.bf16.mxu0 0
  %163 = vmatpush1.bf16.msra.mxu0 0
  %164 = vmatprep.subr.bf16.mxu0 0
  %165 = vmatpush1.bf16.msra.mxu0 0
  %166 = vmatprep.subr.bf16.mxu0 0
  %167 = vmatpush1.bf16.msra.mxu0 0
  %168 = vmatprep.subr.bf16.mxu0 0
  %169 = vmatpush1.bf16.msra.mxu0 0
  %170 = vmatprep.subr.bf16.mxu0 0
  %171 = vmatpush1.bf16.msra.mxu0 0
  %172 = vmatprep.mubr.f32.mxu0 0.0
  %173 = vmatmul.mubr.f32.gmra.mrb[0].mxu0 %v66
  %v174 = vpop.f32.mrb[0].mxu0
  %v175 = vadd.f32 %v91, %v174
  %v176 = vpop.f32.mrb[0].mxu0
  %177 = vdwg.mxu0
  %v178 = vmax.f32 %v175, 0.0
  %v179 = vld [vmem:[%s3 + $0x4] sm:$0xf]
  %v180 = vld [vmem:[%s3 + $0x20] sm:$0xf]
  %v181 = vld [vmem:[%s3 + $0x3c] sm:$0xf]
  %v182 = vld [vmem:[%s3 + $0x58] sm:$0xf]
  %v183 = vld [vmem:[%s3 + $0x74] sm:$0xf]
  %v184 = vld [vmem:[%s3 + $0x90] sm:$0xf]
  %v185 = vld [vmem:[%s3 + $0xac] sm:$0xf]
  %v186 = vld [vmem:[%s3 + $0xc8] sm:$0xf]
  %v187 = vld [vmem:[%s3 + $0xe4] sm:$0xf]
  %v188 = vld [vmem:[%s3 + $0x100] sm:$0xf]
  %v189 = vld [vmem:[%s3 + $0x11c] sm:$0xf]
  %v190 = vld [vmem:[%s3 + $0x138] sm:$0xf]
  %v191 = vld [vmem:[%s3 + $0x154] sm:$0xf]
  %v192 = vld [vmem:[%s3 + $0x170] sm:$0xf]
  %v193 = vld [vmem:[%s3 + $0x18c] sm:$0xf]
  %v194 = vld [vmem:[%s3 + $0x1a8] sm:$0xf]
  %v195 = vld [vmem:[%s4 + $0x1] sm:$0x1]
  %v196 = vlaneseq
  %v197 = vshrl.u32 %v196, 7
  %v198 = vsub.s32 0, %v197
  %v199 = vrot.slane %v195, %v198
  %v216 = vunpack.c.l.b16 %v179
  %v217 = vunpack.c.l.b16 %v180
  %v218 = vunpack.c.l.b16 %v181
  %v219 = vunpack.c.l.b16 %v182
  %v220 = vunpack.c.l.b16 %v183
  %v221 = vunpack.c.l.b16 %v184
  %v222 = vunpack.c.l.b16 %v185
  %v223 = vunpack.c.l.b16 %v186
  %v224 = vunpack.c.l.b16 %v187
  %v225 = vunpack.c.l.b16 %v188
  %v226 = vunpack.c.l.b16 %v189
  %v227 = vunpack.c.l.b16 %v190
  %v228 = vunpack.c.l.b16 %v191
  %v229 = vunpack.c.l.b16 %v192
  %v230 = vunpack.c.l.b16 %v193
  %v231 = vunpack.c.l.b16 %v194
  %v232 = vpack.c.b16 %v217, %v216
  %v233 = vpack.c.b16 %v219, %v218
  %v234 = vpack.c.b16 %v221, %v220
  %v235 = vpack.c.b16 %v223, %v222
  %v236 = vpack.c.b16 %v225, %v224
  %v237 = vpack.c.b16 %v227, %v226
  %v238 = vpack.c.b16 %v229, %v228
  %v239 = vpack.c.b16 %v231, %v230
  %248 = vmatprep.subr.bf16.mxu0 0
  %249 = vmatpush1.bf16.msra.mxu0 %v232
  %250 = vmatprep.subr.bf16.mxu0 0
  %251 = vmatpush1.bf16.msra.mxu0 %v233
  %252 = vmatprep.subr.bf16.mxu0 0
  %253 = vmatpush1.bf16.msra.mxu0 %v234
  %254 = vmatprep.subr.bf16.mxu0 0
  %255 = vmatpush1.bf16.msra.mxu0 %v235
  %256 = vmatprep.subr.bf16.mxu0 0
  %257 = vmatpush1.bf16.msra.mxu0 %v236
  %258 = vmatprep.subr.bf16.mxu0 0
  %259 = vmatpush1.bf16.msra.mxu0 %v237
  %260 = vmatprep.subr.bf16.mxu0 0
  %261 = vmatpush1.bf16.msra.mxu0 %v238
  %262 = vmatprep.subr.bf16.mxu0 0
  %263 = vmatpush1.bf16.msra.mxu0 %v239
  %264 = vmatprep.subr.bf16.mxu0 0
  %265 = vmatpush1.bf16.msra.mxu0 0
  %266 = vmatprep.subr.bf16.mxu0 0
  %267 = vmatpush1.bf16.msra.mxu0 0
  %268 = vmatprep.subr.bf16.mxu0 0
  %269 = vmatpush1.bf16.msra.mxu0 0
  %270 = vmatprep.subr.bf16.mxu0 0
  %271 = vmatpush1.bf16.msra.mxu0 0
  %272 = vmatprep.subr.bf16.mxu0 0
  %273 = vmatpush1.bf16.msra.mxu0 0
  %274 = vmatprep.subr.bf16.mxu0 0
  %275 = vmatpush1.bf16.msra.mxu0 0
  %276 = vmatprep.subr.bf16.mxu0 0
  %277 = vmatpush1.bf16.msra.mxu0 0
  %278 = vmatprep.subr.bf16.mxu0 0
  %279 = vmatpush1.bf16.msra.mxu0 0
  %280 = vmatprep.mubr.f32.mxu0 0.0
  %281 = vmatmul.mubr.f32.gmra.mrb[0].mxu0 %v178
  %v282 = vpop.f32.mrb[0].mxu0
  %v283 = vadd.f32 %v199, %v282
  %v284 = vpop.f32.mrb[0].mxu0
  %285 = vdwg.mxu0
  %v286 = vmax.f32 %v283, 0.0
  %v287 = vld [vmem:[%s4 + $0x2] sm:$0x1]
  %v288 = vlaneseq
  %v289 = vshrl.u32 %v288, 7
  %v290 = vsub.s32 0, %v289
  %v291 = vrot.slane %v287, %v290
  %v292 = vmul.f32 %v286, %v291
  %v293 = vld [vmem:[%s4 + $0x3] sm:$0x1]
  %v294 = vlaneseq
  %v295 = vshrl.u32 %v294, 7
  %v296 = vsub.s32 0, %v295
  %v297 = vrot.slane %v293, %v296
  %v298 = vadd.f32 %v292, %v297
  %299 = vmatprep.subr.mxu0 0.0
  %300 = vmatpush1.msra.mxu0 %v298
  %301 = vmatprep.subr.mxu0 0.0
  %302 = vmatpush1.msra.mxu0 0.0
  %303 = vmatprep.subr.mxu0 0.0
  %304 = vmatpush1.msra.mxu0 0.0
  %305 = vmatprep.subr.mxu0 0.0
  %306 = vmatpush1.msra.mxu0 0.0
  %307 = vmatprep.subr.mxu0 0.0
  %308 = vmatpush1.msra.mxu0 0.0
  %309 = vmatprep.subr.mxu0 0.0
  %310 = vmatpush1.msra.mxu0 0.0
  %311 = vmatprep.subr.mxu0 0.0
  %312 = vmatpush1.msra.mxu0 0.0
  %313 = vmatprep.subr.mxu0 0.0
  %314 = vmatpush1.msra.mxu0 0.0
  %315 = vmatprep.subr.mxu0 0.0
  %316 = vmatpush1.msra.mxu0 0.0
  %317 = vmatprep.subr.mxu0 0.0
  %318 = vmatpush1.msra.mxu0 0.0
  %319 = vmatprep.subr.mxu0 0.0
  %320 = vmatpush1.msra.mxu0 0.0
  %321 = vmatprep.subr.mxu0 0.0
  %322 = vmatpush1.msra.mxu0 0.0
  %323 = vmatprep.subr.mxu0 0.0
  %324 = vmatpush1.msra.mxu0 0.0
  %325 = vmatprep.subr.mxu0 0.0
  %326 = vmatpush1.msra.mxu0 0.0
  %327 = vmatprep.subr.mxu0 0.0
  %328 = vmatpush1.msra.mxu0 0.0
  %329 = vmatprep.subr.mxu0 0.0
  %330 = vmatpush1.msra.mxu0 0.0
  %331 = vmatprep.subr.mxu0 0.0
  %332 = vmatpush1.msra.mxu0 0.0
  %333 = vmatprep.subr.mxu0 0.0
  %334 = vmatpush1.msra.mxu0 0.0
  %335 = vmatprep.subr.mxu0 0.0
  %336 = vmatpush1.msra.mxu0 0.0
  %337 = vmatprep.subr.mxu0 0.0
  %338 = vmatpush1.msra.mxu0 0.0
  %339 = vmatprep.subr.mxu0 0.0
  %340 = vmatpush1.msra.mxu0 0.0
  %341 = vmatprep.subr.mxu0 0.0
  %342 = vmatpush1.msra.mxu0 0.0
  %343 = vmatprep.subr.mxu0 0.0
  %344 = vmatpush1.msra.mxu0 0.0
  %345 = vmatprep.subr.mxu0 0.0
  %346 = vmatpush1.msra.mxu0 0.0
  %347 = vmatprep.subr.mxu0 0.0
  %348 = vmatpush1.msra.mxu0 0.0
  %349 = vmatprep.subr.mxu0 0.0
  %350 = vmatpush1.msra.mxu0 0.0
  %351 = vmatprep.subr.mxu0 0.0
  %352 = vmatpush1.msra.mxu0 0.0
  %353 = vmatprep.subr.mxu0 0.0
  %354 = vmatpush1.msra.mxu0 0.0
  %355 = vmatprep.subr.mxu0 0.0
  %356 = vmatpush1.msra.mxu0 0.0
  %357 = vmatprep.subr.mxu0 0.0
  %358 = vmatpush1.msra.mxu0 0.0
  %359 = vmatprep.subr.mxu0 0.0
  %360 = vmatpush1.msra.mxu0 0.0
  %361 = vmatprep.subr.mxu0 0.0
  %362 = vmatpush1.msra.mxu0 0.0
  %363 = vmatprep.mubr.bf16.mxu0 0
  %364 = vmatmul.mubr.bf16.gmra.mrb[0].mxu0 %v25
  %v365 = vpop.f32.mrb[0].mxu0
  %v366 = vadd.f32 0.0, %v365
  %v367 = vpop.f32.mrb[0].mxu0
  %v368 = vpop.f32.mrb[0].mxu0
  %v369 = vpop.f32.mrb[0].mxu0
  %370 = vdwg.mxu0
  %v371 = vld [vmem:[%s3 + $0x8] sm:$0xf]
  %v372 = vld [vmem:[%s3 + $0x24] sm:$0xf]
  %v373 = vld [vmem:[%s3 + $0x40] sm:$0xf]
  %v374 = vld [vmem:[%s3 + $0x5c] sm:$0xf]
  %v375 = vld [vmem:[%s3 + $0x78] sm:$0xf]
  %v376 = vld [vmem:[%s3 + $0x94] sm:$0xf]
  %v377 = vld [vmem:[%s3 + $0xb0] sm:$0xf]
  %v378 = vld [vmem:[%s3 + $0xcc] sm:$0xf]
  %v379 = vld [vmem:[%s3 + $0xe8] sm:$0xf]
  %v380 = vld [vmem:[%s3 + $0x104] sm:$0xf]
  %v381 = vld [vmem:[%s3 + $0x120] sm:$0xf]
  %v382 = vld [vmem:[%s3 + $0x13c] sm:$0xf]
  %v383 = vld [vmem:[%s3 + $0x158] sm:$0xf]
  %v384 = vld [vmem:[%s3 + $0x174] sm:$0xf]
  %v385 = vld [vmem:[%s3 + $0x190] sm:$0xf]
  %v386 = vld [vmem:[%s3 + $0x1ac] sm:$0xf]
  %v387 = vld [vmem:[%s4 + $0x4] sm:$0x1]
  %v388 = vlaneseq
  %v389 = vshrl.u32 %v388, 7
  %v390 = vsub.s32 0, %v389
  %v391 = vrot.slane %v387, %v390
  %v408 = vunpack.c.l.b16 %v371
  %v409 = vunpack.c.l.b16 %v372
  %v410 = vunpack.c.l.b16 %v373
  %v411 = vunpack.c.l.b16 %v374
  %v412 = vunpack.c.l.b16 %v375
  %v413 = vunpack.c.l.b16 %v376
  %v414 = vunpack.c.l.b16 %v377
  %v415 = vunpack.c.l.b16 %v378
  %v416 = vunpack.c.l.b16 %v379
  %v417 = vunpack.c.l.b16 %v380
  %v418 = vunpack.c.l.b16 %v381
  %v419 = vunpack.c.l.b16 %v382
  %v420 = vunpack.c.l.b16 %v383
  %v421 = vunpack.c.l.b16 %v384
  %v422 = vunpack.c.l.b16 %v385
  %v423 = vunpack.c.l.b16 %v386
  %v424 = vpack.c.b16 %v409, %v408
  %v425 = vpack.c.b16 %v411, %v410
  %v426 = vpack.c.b16 %v413, %v412
  %v427 = vpack.c.b16 %v415, %v414
  %v428 = vpack.c.b16 %v417, %v416
  %v429 = vpack.c.b16 %v419, %v418
  %v430 = vpack.c.b16 %v421, %v420
  %v431 = vpack.c.b16 %v423, %v422
  %440 = vmatprep.subr.bf16.mxu0 0
  %441 = vmatpush1.bf16.msra.mxu0 %v424
  %442 = vmatprep.subr.bf16.mxu0 0
  %443 = vmatpush1.bf16.msra.mxu0 %v425
  %444 = vmatprep.subr.bf16.mxu0 0
  %445 = vmatpush1.bf16.msra.mxu0 %v426
  %446 = vmatprep.subr.bf16.mxu0 0
  %447 = vmatpush1.bf16.msra.mxu0 %v427
  %448 = vmatprep.subr.bf16.mxu0 0
  %449 = vmatpush1.bf16.msra.mxu0 %v428
  %450 = vmatprep.subr.bf16.mxu0 0
  %451 = vmatpush1.bf16.msra.mxu0 %v429
  %452 = vmatprep.subr.bf16.mxu0 0
  %453 = vmatpush1.bf16.msra.mxu0 %v430
  %454 = vmatprep.subr.bf16.mxu0 0
  %455 = vmatpush1.bf16.msra.mxu0 %v431
  %456 = vmatprep.subr.bf16.mxu0 0
  %457 = vmatpush1.bf16.msra.mxu0 0
  %458 = vmatprep.subr.bf16.mxu0 0
  %459 = vmatpush1.bf16.msra.mxu0 0
  %460 = vmatprep.subr.bf16.mxu0 0
  %461 = vmatpush1.bf16.msra.mxu0 0
  %462 = vmatprep.subr.bf16.mxu0 0
  %463 = vmatpush1.bf16.msra.mxu0 0
  %464 = vmatprep.subr.bf16.mxu0 0
  %465 = vmatpush1.bf16.msra.mxu0 0
  %466 = vmatprep.subr.bf16.mxu0 0
  %467 = vmatpush1.bf16.msra.mxu0 0
  %468 = vmatprep.subr.bf16.mxu0 0
  %469 = vmatpush1.bf16.msra.mxu0 0
  %470 = vmatprep.subr.bf16.mxu0 0
  %471 = vmatpush1.bf16.msra.mxu0 0
  %472 = vmatprep.mubr.f32.mxu0 0.0
  %473 = vmatmul.mubr.f32.gmra.mrb[0].mxu0 %v366
  %v474 = vpop.f32.mrb[0].mxu0
  %v475 = vadd.f32 %v391, %v474
  %v476 = vpop.f32.mrb[0].mxu0
  %477 = vdwg.mxu0
  %v478 = vmax.f32 %v475, 0.0
  %v479 = vld [vmem:[%s3 + $0xc] sm:$0xf]
  %v480 = vld [vmem:[%s3 + $0x28] sm:$0xf]
  %v481 = vld [vmem:[%s3 + $0x44] sm:$0xf]
  %v482 = vld [vmem:[%s3 + $0x60] sm:$0xf]
  %v483 = vld [vmem:[%s3 + $0x7c] sm:$0xf]
  %v484 = vld [vmem:[%s3 + $0x98] sm:$0xf]
  %v485 = vld [vmem:[%s3 + $0xb4] sm:$0xf]
  %v486 = vld [vmem:[%s3 + $0xd0] sm:$0xf]
  %v487 = vld [vmem:[%s3 + $0xec] sm:$0xf]
  %v488 = vld [vmem:[%s3 + $0x108] sm:$0xf]
  %v489 = vld [vmem:[%s3 + $0x124] sm:$0xf]
  %v490 = vld [vmem:[%s3 + $0x140] sm:$0xf]
  %v491 = vld [vmem:[%s3 + $0x15c] sm:$0xf]
  %v492 = vld [vmem:[%s3 + $0x178] sm:$0xf]
  %v493 = vld [vmem:[%s3 + $0x194] sm:$0xf]
  %v494 = vld [vmem:[%s3 + $0x1b0] sm:$0xf]
  %v495 = vld [vmem:[%s4 + $0x5] sm:$0x1]
  %v496 = vlaneseq
  %v497 = vshrl.u32 %v496, 7
  %v498 = vsub.s32 0, %v497
  %v499 = vrot.slane %v495, %v498
  %v516 = vunpack.c.l.b16 %v479
  %v517 = vunpack.c.l.b16 %v480
  %v518 = vunpack.c.l.b16 %v481
  %v519 = vunpack.c.l.b16 %v482
  %v520 = vunpack.c.l.b16 %v483
  %v521 = vunpack.c.l.b16 %v484
  %v522 = vunpack.c.l.b16 %v485
  %v523 = vunpack.c.l.b16 %v486
  %v524 = vunpack.c.l.b16 %v487
  %v525 = vunpack.c.l.b16 %v488
  %v526 = vunpack.c.l.b16 %v489
  %v527 = vunpack.c.l.b16 %v490
  %v528 = vunpack.c.l.b16 %v491
  %v529 = vunpack.c.l.b16 %v492
  %v530 = vunpack.c.l.b16 %v493
  %v531 = vunpack.c.l.b16 %v494
  %v532 = vpack.c.b16 %v517, %v516
  %v533 = vpack.c.b16 %v519, %v518
  %v534 = vpack.c.b16 %v521, %v520
  %v535 = vpack.c.b16 %v523, %v522
  %v536 = vpack.c.b16 %v525, %v524
  %v537 = vpack.c.b16 %v527, %v526
  %v538 = vpack.c.b16 %v529, %v528
  %v539 = vpack.c.b16 %v531, %v530
  %548 = vmatprep.subr.bf16.mxu0 0
  %549 = vmatpush1.bf16.msra.mxu0 %v532
  %550 = vmatprep.subr.bf16.mxu0 0
  %551 = vmatpush1.bf16.msra.mxu0 %v533
  %552 = vmatprep.subr.bf16.mxu0 0
  %553 = vmatpush1.bf16.msra.mxu0 %v534
  %554 = vmatprep.subr.bf16.mxu0 0
  %555 = vmatpush1.bf16.msra.mxu0 %v535
  %556 = vmatprep.subr.bf16.mxu0 0
  %557 = vmatpush1.bf16.msra.mxu0 %v536
  %558 = vmatprep.subr.bf16.mxu0 0
  %559 = vmatpush1.bf16.msra.mxu0 %v537
  %560 = vmatprep.subr.bf16.mxu0 0
  %561 = vmatpush1.bf16.msra.mxu0 %v538
  %562 = vmatprep.subr.bf16.mxu0 0
  %563 = vmatpush1.bf16.msra.mxu0 %v539
  %564 = vmatprep.subr.bf16.mxu0 0
  %565 = vmatpush1.bf16.msra.mxu0 0
  %566 = vmatprep.subr.bf16.mxu0 0
  %567 = vmatpush1.bf16.msra.mxu0 0
  %568 = vmatprep.subr.bf16.mxu0 0
  %569 = vmatpush1.bf16.msra.mxu0 0
  %570 = vmatprep.subr.bf16.mxu0 0
  %571 = vmatpush1.bf16.msra.mxu0 0
  %572 = vmatprep.subr.bf16.mxu0 0
  %573 = vmatpush1.bf16.msra.mxu0 0
  %574 = vmatprep.subr.bf16.mxu0 0
  %575 = vmatpush1.bf16.msra.mxu0 0
  %576 = vmatprep.subr.bf16.mxu0 0
  %577 = vmatpush1.bf16.msra.mxu0 0
  %578 = vmatprep.subr.bf16.mxu0 0
  %579 = vmatpush1.bf16.msra.mxu0 0
  %580 = vmatprep.mubr.f32.mxu0 0.0
  %581 = vmatmul.mubr.f32.gmra.mrb[0].mxu0 %v478
  %v582 = vpop.f32.mrb[0].mxu0
  %v583 = vadd.f32 %v499, %v582
  %v584 = vpop.f32.mrb[0].mxu0
  %585 = vdwg.mxu0
  %v586 = vmax.f32 %v583, 0.0
  %v587 = vld [vmem:[%s4 + $0x6] sm:$0x1]
  %v588 = vlaneseq
  %v589 = vshrl.u32 %v588, 7
  %v590 = vsub.s32 0, %v589
  %v591 = vrot.slane %v587, %v590
  %v592 = vmul.f32 %v586, %v591
  %v593 = vld [vmem:[%s4 + $0x7] sm:$0x1]
  %v594 = vlaneseq
  %v595 = vshrl.u32 %v594, 7
  %v596 = vsub.s32 0, %v595
  %v597 = vrot.slane %v593, %v596
  %v598 = vadd.f32 %v592, %v597
  %v599 = vld [vmem:[%s1] sm:$0xff]
  %v601 = vsel %vm23, %v599, 0
  %603 = vmatprep.subr.mxu0 0.0
  %604 = vmatpush1.msra.mxu0 %v598
  %605 = vmatprep.subr.mxu0 0.0
  %606 = vmatpush1.msra.mxu0 0.0
  %607 = vmatprep.subr.mxu0 0.0
  %608 = vmatpush1.msra.mxu0 0.0
  %609 = vmatprep.subr.mxu0 0.0
  %610 = vmatpush1.msra.mxu0 0.0
  %611 = vmatprep.subr.mxu0 0.0
  %612 = vmatpush1.msra.mxu0 0.0
  %613 = vmatprep.subr.mxu0 0.0
  %614 = vmatpush1.msra.mxu0 0.0
  %615 = vmatprep.subr.mxu0 0.0
  %616 = vmatpush1.msra.mxu0 0.0
  %617 = vmatprep.subr.mxu0 0.0
  %618 = vmatpush1.msra.mxu0 0.0
  %619 = vmatprep.subr.mxu0 0.0
  %620 = vmatpush1.msra.mxu0 0.0
  %621 = vmatprep.subr.mxu0 0.0
  %622 = vmatpush1.msra.mxu0 0.0
  %623 = vmatprep.subr.mxu0 0.0
  %624 = vmatpush1.msra.mxu0 0.0
  %625 = vmatprep.subr.mxu0 0.0
  %626 = vmatpush1.msra.mxu0 0.0
  %627 = vmatprep.subr.mxu0 0.0
  %628 = vmatpush1.msra.mxu0 0.0
  %629 = vmatprep.subr.mxu0 0.0
  %630 = vmatpush1.msra.mxu0 0.0
  %631 = vmatprep.subr.mxu0 0.0
  %632 = vmatpush1.msra.mxu0 0.0
  %633 = vmatprep.subr.mxu0 0.0
  %634 = vmatpush1.msra.mxu0 0.0
  %635 = vmatprep.subr.mxu0 0.0
  %636 = vmatpush1.msra.mxu0 0.0
  %637 = vmatprep.subr.mxu0 0.0
  %638 = vmatpush1.msra.mxu0 0.0
  %639 = vmatprep.subr.mxu0 0.0
  %640 = vmatpush1.msra.mxu0 0.0
  %641 = vmatprep.subr.mxu0 0.0
  %642 = vmatpush1.msra.mxu0 0.0
  %643 = vmatprep.subr.mxu0 0.0
  %644 = vmatpush1.msra.mxu0 0.0
  %645 = vmatprep.subr.mxu0 0.0
  %646 = vmatpush1.msra.mxu0 0.0
  %647 = vmatprep.subr.mxu0 0.0
  %648 = vmatpush1.msra.mxu0 0.0
  %649 = vmatprep.subr.mxu0 0.0
  %650 = vmatpush1.msra.mxu0 0.0
  %651 = vmatprep.subr.mxu0 0.0
  %652 = vmatpush1.msra.mxu0 0.0
  %653 = vmatprep.subr.mxu0 0.0
  %654 = vmatpush1.msra.mxu0 0.0
  %655 = vmatprep.subr.mxu0 0.0
  %656 = vmatpush1.msra.mxu0 0.0
  %657 = vmatprep.subr.mxu0 0.0
  %658 = vmatpush1.msra.mxu0 0.0
  %659 = vmatprep.subr.mxu0 0.0
  %660 = vmatpush1.msra.mxu0 0.0
  %661 = vmatprep.subr.mxu0 0.0
  %662 = vmatpush1.msra.mxu0 0.0
  %663 = vmatprep.subr.mxu0 0.0
  %664 = vmatpush1.msra.mxu0 0.0
  %665 = vmatprep.subr.mxu0 0.0
  %666 = vmatpush1.msra.mxu0 0.0
  %667 = vmatprep.mubr.f32.mxu0 0.0
  %668 = vmatmul.mubr.f32.gmra.mrb[0].mxu0 %v601
  %v669 = vpop.f32.mrb[0].mxu0
  %v670 = vadd.f32 0.0, %v669
  %v671 = vpop.f32.mrb[0].mxu0
  %672 = vdwg.mxu0
  %v673 = vld [vmem:[%s3 + $0x10] sm:$0xf]
  %v674 = vld [vmem:[%s3 + $0x2c] sm:$0xf]
  %v675 = vld [vmem:[%s3 + $0x48] sm:$0xf]
  %v676 = vld [vmem:[%s3 + $0x64] sm:$0xf]
  %v677 = vld [vmem:[%s3 + $0x80] sm:$0xf]
  %v678 = vld [vmem:[%s3 + $0x9c] sm:$0xf]
  %v679 = vld [vmem:[%s3 + $0xb8] sm:$0xf]
  %v680 = vld [vmem:[%s3 + $0xd4] sm:$0xf]
  %v681 = vld [vmem:[%s3 + $0xf0] sm:$0xf]
  %v682 = vld [vmem:[%s3 + $0x10c] sm:$0xf]
  %v683 = vld [vmem:[%s3 + $0x128] sm:$0xf]
  %v684 = vld [vmem:[%s3 + $0x144] sm:$0xf]
  %v685 = vld [vmem:[%s3 + $0x160] sm:$0xf]
  %v686 = vld [vmem:[%s3 + $0x17c] sm:$0xf]
  %v687 = vld [vmem:[%s3 + $0x198] sm:$0xf]
  %v688 = vld [vmem:[%s3 + $0x1b4] sm:$0xf]
  %v689 = vld [vmem:[%s4 + $0x8] sm:$0x1]
  %v690 = vlaneseq
  %v691 = vshrl.u32 %v690, 7
  %v692 = vsub.s32 0, %v691
  %v693 = vrot.slane %v689, %v692
  %v710 = vunpack.c.l.b16 %v673
  %v711 = vunpack.c.l.b16 %v674
  %v712 = vunpack.c.l.b16 %v675
  %v713 = vunpack.c.l.b16 %v676
  %v714 = vunpack.c.l.b16 %v677
  %v715 = vunpack.c.l.b16 %v678
  %v716 = vunpack.c.l.b16 %v679
  %v717 = vunpack.c.l.b16 %v680
  %v718 = vunpack.c.l.b16 %v681
  %v719 = vunpack.c.l.b16 %v682
  %v720 = vunpack.c.l.b16 %v683
  %v721 = vunpack.c.l.b16 %v684
  %v722 = vunpack.c.l.b16 %v685
  %v723 = vunpack.c.l.b16 %v686
  %v724 = vunpack.c.l.b16 %v687
  %v725 = vunpack.c.l.b16 %v688
  %v726 = vpack.c.b16 %v711, %v710
  %v727 = vpack.c.b16 %v713, %v712
  %v728 = vpack.c.b16 %v715, %v714
  %v729 = vpack.c.b16 %v717, %v716
  %v730 = vpack.c.b16 %v719, %v718
  %v731 = vpack.c.b16 %v721, %v720
  %v732 = vpack.c.b16 %v723, %v722
  %v733 = vpack.c.b16 %v725, %v724
  %742 = vmatprep.subr.bf16.mxu0 0
  %743 = vmatpush1.bf16.msra.mxu0 %v726
  %744 = vmatprep.subr.bf16.mxu0 0
  %745 = vmatpush1.bf16.msra.mxu0 %v727
  %746 = vmatprep.subr.bf16.mxu0 0
  %747 = vmatpush1.bf16.msra.mxu0 %v728
  %748 = vmatprep.subr.bf16.mxu0 0
  %749 = vmatpush1.bf16.msra.mxu0 %v729
  %750 = vmatprep.subr.bf16.mxu0 0
  %751 = vmatpush1.bf16.msra.mxu0 %v730
  %752 = vmatprep.subr.bf16.mxu0 0
  %753 = vmatpush1.bf16.msra.mxu0 %v731
  %754 = vmatprep.subr.bf16.mxu0 0
  %755 = vmatpush1.bf16.msra.mxu0 %v732
  %756 = vmatprep.subr.bf16.mxu0 0
  %757 = vmatpush1.bf16.msra.mxu0 %v733
  %758 = vmatprep.subr.bf16.mxu0 0
  %759 = vmatpush1.bf16.msra.mxu0 0
  %760 = vmatprep.subr.bf16.mxu0 0
  %761 = vmatpush1.bf16.msra.mxu0 0
  %762 = vmatprep.subr.bf16.mxu0 0
  %763 = vmatpush1.bf16.msra.mxu0 0
  %764 = vmatprep.subr.bf16.mxu0 0
  %765 = vmatpush1.bf16.msra.mxu0 0
  %766 = vmatprep.subr.bf16.mxu0 0
  %767 = vmatpush1.bf16.msra.mxu0 0
  %768 = vmatprep.subr.bf16.mxu0 0
  %769 = vmatpush1.bf16.msra.mxu0 0
  %770 = vmatprep.subr.bf16.mxu0 0
  %771 = vmatpush1.bf16.msra.mxu0 0
  %772 = vmatprep.subr.bf16.mxu0 0
  %773 = vmatpush1.bf16.msra.mxu0 0
  %774 = vmatprep.mubr.f32.mxu0 0.0
  %775 = vmatmul.mubr.f32.gmra.mrb[0].mxu0 %v670
  %v776 = vpop.f32.mrb[0].mxu0
  %v777 = vadd.f32 %v693, %v776
  %v778 = vpop.f32.mrb[0].mxu0
  %779 = vdwg.mxu0
  %v780 = vmax.f32 %v777, 0.0
  %v781 = vld [vmem:[%s3 + $0x14] sm:$0xf]
  %v782 = vld [vmem:[%s3 + $0x30] sm:$0xf]
  %v783 = vld [vmem:[%s3 + $0x4c] sm:$0xf]
  %v784 = vld [vmem:[%s3 + $0x68] sm:$0xf]
  %v785 = vld [vmem:[%s3 + $0x84] sm:$0xf]
  %v786 = vld [vmem:[%s3 + $0xa0] sm:$0xf]
  %v787 = vld [vmem:[%s3 + $0xbc] sm:$0xf]
  %v788 = vld [vmem:[%s3 + $0xd8] sm:$0xf]
  %v789 = vld [vmem:[%s3 + $0xf4] sm:$0xf]
  %v790 = vld [vmem:[%s3 + $0x110] sm:$0xf]
  %v791 = vld [vmem:[%s3 + $0x12c] sm:$0xf]
  %v792 = vld [vmem:[%s3 + $0x148] sm:$0xf]
  %v793 = vld [vmem:[%s3 + $0x164] sm:$0xf]
  %v794 = vld [vmem:[%s3 + $0x180] sm:$0xf]
  %v795 = vld [vmem:[%s3 + $0x19c] sm:$0xf]
  %v796 = vld [vmem:[%s3 + $0x1b8] sm:$0xf]
  %v797 = vld [vmem:[%s4 + $0x9] sm:$0x1]
  %v798 = vlaneseq
  %v799 = vshrl.u32 %v798, 7
  %v800 = vsub.s32 0, %v799
  %v801 = vrot.slane %v797, %v800
  %v818 = vunpack.c.l.b16 %v781
  %v819 = vunpack.c.l.b16 %v782
  %v820 = vunpack.c.l.b16 %v783
  %v821 = vunpack.c.l.b16 %v784
  %v822 = vunpack.c.l.b16 %v785
  %v823 = vunpack.c.l.b16 %v786
  %v824 = vunpack.c.l.b16 %v787
  %v825 = vunpack.c.l.b16 %v788
  %v826 = vunpack.c.l.b16 %v789
  %v827 = vunpack.c.l.b16 %v790
  %v828 = vunpack.c.l.b16 %v791
  %v829 = vunpack.c.l.b16 %v792
  %v830 = vunpack.c.l.b16 %v793
  %v831 = vunpack.c.l.b16 %v794
  %v832 = vunpack.c.l.b16 %v795
  %v833 = vunpack.c.l.b16 %v796
  %v834 = vpack.c.b16 %v819, %v818
  %v835 = vpack.c.b16 %v821, %v820
  %v836 = vpack.c.b16 %v823, %v822
  %v837 = vpack.c.b16 %v825, %v824
  %v838 = vpack.c.b16 %v827, %v826
  %v839 = vpack.c.b16 %v829, %v828
  %v840 = vpack.c.b16 %v831, %v830
  %v841 = vpack.c.b16 %v833, %v832
  %850 = vmatprep.subr.bf16.mxu0 0
  %851 = vmatpush1.bf16.msra.mxu0 %v834
  %852 = vmatprep.subr.bf16.mxu0 0
  %853 = vmatpush1.bf16.msra.mxu0 %v835
  %854 = vmatprep.subr.bf16.mxu0 0
  %855 = vmatpush1.bf16.msra.mxu0 %v836
  %856 = vmatprep.subr.bf16.mxu0 0
  %857 = vmatpush1.bf16.msra.mxu0 %v837
  %858 = vmatprep.subr.bf16.mxu0 0
  %859 = vmatpush1.bf16.msra.mxu0 %v838
  %860 = vmatprep.subr.bf16.mxu0 0
  %861 = vmatpush1.bf16.msra.mxu0 %v839
  %862 = vmatprep.subr.bf16.mxu0 0
  %863 = vmatpush1.bf16.msra.mxu0 %v840
  %864 = vmatprep.subr.bf16.mxu0 0
  %865 = vmatpush1.bf16.msra.mxu0 %v841
  %866 = vmatprep.subr.bf16.mxu0 0
  %867 = vmatpush1.bf16.msra.mxu0 0
  %868 = vmatprep.subr.bf16.mxu0 0
  %869 = vmatpush1.bf16.msra.mxu0 0
  %870 = vmatprep.subr.bf16.mxu0 0
  %871 = vmatpush1.bf16.msra.mxu0 0
  %872 = vmatprep.subr.bf16.mxu0 0
  %873 = vmatpush1.bf16.msra.mxu0 0
  %874 = vmatprep.subr.bf16.mxu0 0
  %875 = vmatpush1.bf16.msra.mxu0 0
  %876 = vmatprep.subr.bf16.mxu0 0
  %877 = vmatpush1.bf16.msra.mxu0 0
  %878 = vmatprep.subr.bf16.mxu0 0
  %879 = vmatpush1.bf16.msra.mxu0 0
  %880 = vmatprep.subr.bf16.mxu0 0
  %881 = vmatpush1.bf16.msra.mxu0 0
  %882 = vmatprep.mubr.f32.mxu0 0.0
  %883 = vmatmul.mubr.f32.gmra.mrb[0].mxu0 %v780
  %v884 = vpop.f32.mrb[0].mxu0
  %v885 = vadd.f32 %v801, %v884
  %v886 = vpop.f32.mrb[0].mxu0
  %887 = vdwg.mxu0
  %v888 = vmax.f32 %v885, 0.0
  %v889 = vld [vmem:[%s3 + $0x18] sm:$0xf]
  %v890 = vld [vmem:[%s3 + $0x34] sm:$0xf]
  %v891 = vld [vmem:[%s3 + $0x50] sm:$0xf]
  %v892 = vld [vmem:[%s3 + $0x6c] sm:$0xf]
  %v893 = vld [vmem:[%s3 + $0x88] sm:$0xf]
  %v894 = vld [vmem:[%s3 + $0xa4] sm:$0xf]
  %v895 = vld [vmem:[%s3 + $0xc0] sm:$0xf]
  %v896 = vld [vmem:[%s3 + $0xdc] sm:$0xf]
  %v897 = vld [vmem:[%s3 + $0xf8] sm:$0xf]
  %v898 = vld [vmem:[%s3 + $0x114] sm:$0xf]
  %v899 = vld [vmem:[%s3 + $0x130] sm:$0xf]
  %v900 = vld [vmem:[%s3 + $0x14c] sm:$0xf]
  %v901 = vld [vmem:[%s3 + $0x168] sm:$0xf]
  %v902 = vld [vmem:[%s3 + $0x184] sm:$0xf]
  %v903 = vld [vmem:[%s3 + $0x1a0] sm:$0xf]
  %v904 = vld [vmem:[%s3 + $0x1bc] sm:$0xf]
  %v921 = vunpack.c.l.b16 %v889
  %v922 = vunpack.c.l.b16 %v890
  %v923 = vunpack.c.l.b16 %v891
  %v924 = vunpack.c.l.b16 %v892
  %v925 = vunpack.c.l.b16 %v893
  %v926 = vunpack.c.l.b16 %v894
  %v927 = vunpack.c.l.b16 %v895
  %v928 = vunpack.c.l.b16 %v896
  %v929 = vunpack.c.l.b16 %v897
  %v930 = vunpack.c.l.b16 %v898
  %v931 = vunpack.c.l.b16 %v899
  %v932 = vunpack.c.l.b16 %v900
  %v933 = vunpack.c.l.b16 %v901
  %v934 = vunpack.c.l.b16 %v902
  %v935 = vunpack.c.l.b16 %v903
  %v936 = vunpack.c.l.b16 %v904
  %v937 = vpack.c.b16 %v922, %v921
  %v938 = vpack.c.b16 %v924, %v923
  %v939 = vpack.c.b16 %v926, %v925
  %v940 = vpack.c.b16 %v928, %v927
  %v941 = vpack.c.b16 %v930, %v929
  %v942 = vpack.c.b16 %v932, %v931
  %v943 = vpack.c.b16 %v934, %v933
  %v944 = vpack.c.b16 %v936, %v935
  %953 = vmatprep.subr.bf16.mxu0 0
  %954 = vmatpush1.bf16.msra.mxu0 %v937
  %955 = vmatprep.subr.bf16.mxu0 0
  %956 = vmatpush1.bf16.msra.mxu0 %v938
  %957 = vmatprep.subr.bf16.mxu0 0
  %958 = vmatpush1.bf16.msra.mxu0 %v939
  %959 = vmatprep.subr.bf16.mxu0 0
  %960 = vmatpush1.bf16.msra.mxu0 %v940
  %961 = vmatprep.subr.bf16.mxu0 0
  %962 = vmatpush1.bf16.msra.mxu0 %v941
  %963 = vmatprep.subr.bf16.mxu0 0
  %964 = vmatpush1.bf16.msra.mxu0 %v942
  %965 = vmatprep.subr.bf16.mxu0 0
  %966 = vmatpush1.bf16.msra.mxu0 %v943
  %967 = vmatprep.subr.bf16.mxu0 0
  %968 = vmatpush1.bf16.msra.mxu0 %v944
  %969 = vmatprep.subr.bf16.mxu0 0
  %970 = vmatpush1.bf16.msra.mxu0 0
  %971 = vmatprep.subr.bf16.mxu0 0
  %972 = vmatpush1.bf16.msra.mxu0 0
  %973 = vmatprep.subr.bf16.mxu0 0
  %974 = vmatpush1.bf16.msra.mxu0 0
  %975 = vmatprep.subr.bf16.mxu0 0
  %976 = vmatpush1.bf16.msra.mxu0 0
  %977 = vmatprep.subr.bf16.mxu0 0
  %978 = vmatpush1.bf16.msra.mxu0 0
  %979 = vmatprep.subr.bf16.mxu0 0
  %980 = vmatpush1.bf16.msra.mxu0 0
  %981 = vmatprep.subr.bf16.mxu0 0
  %982 = vmatpush1.bf16.msra.mxu0 0
  %983 = vmatprep.subr.bf16.mxu0 0
  %984 = vmatpush1.bf16.msra.mxu0 0
  %985 = vmatprep.mubr.f32.mxu0 0.0
  %986 = vmatmul.mubr.f32.gmra.mrb[0].mxu0 %v888
  %v987 = vpop.f32.mrb[0].mxu0
  %v988 = vadd.f32 0.0, %v987
  %v989 = vpop.f32.mrb[0].mxu0
  %990 = vdwg.mxu0
  %v991 = vlaneseq
  %v992 = vand.u32 %v991, 127
  %vm993 = vcmp.lt.s32.totalorder %v992, 3
  %vm994 = vcmp.ge.s32.totalorder %v992, 3
  %vm995 = vcmp.lt.s32.totalorder %v992, 5
  %vm996 = vmand %vm994, %vm995
  %v997 = vsel %vm993, %v885, 0.0
  %v998 = vadd.f32 %v997, %v988
  %v999 = vld [vmem:[%s4 + $0xa] sm:$0x1]
  %v1000 = vlaneseq
  %v1001 = vshrl.u32 %v1000, 7
  %v1002 = vsub.s32 0, %v1001
  %v1003 = vrot.slane %v999, %v1002
  %v1004 = vadd.f32 %v998, %v1003
  %v1005 = vsel %vm993, %v1004, -1e+30
  %1006 = vmax.xlane.f32.xlu0 %v1005
  %v1007 = vpop.xlane.xlu0 %1006
  %v1008 = vsub.f32 %v1004, %v1007
  %v1009 = vsel %vm993, %v1008, -1e+30
  %v1010 = vmul.f32 %v1009, 1.442695
  %v1011 = vpow.pop %v1010
  %1012 = vadd.xlane.f32.xlu0 %v1011
  %v1013 = vpop.xlane.xlu0 %1012
  %v1014 = vlog2.pop %v1013
  %v1015 = vmul.f32 %v1014, 0.6931472
  %v1016 = vsub.f32 %v1008, %v1015
  %v1017 = vsel %vm996, %v1004, -1e+30
  %1018 = vmax.xlane.f32.xlu0 %v1017
  %v1019 = vpop.xlane.xlu0 %1018
  %v1020 = vsub.f32 %v1004, %v1019
  %v1021 = vsel %vm996, %v1020, -1e+30
  %v1022 = vmul.f32 %v1021, 1.442695
  %v1023 = vpow.pop %v1022
  %1024 = vadd.xlane.f32.xlu0 %v1023
  %v1025 = vpop.xlane.xlu0 %1024
  %v1026 = vlog2.pop %v1025
  %v1027 = vmul.f32 %v1026, 0.6931472
  %v1028 = vsub.f32 %v1020, %v1027
  %v1029 = vsel %vm996, %v1028, 0.0
  %v1030 = vsel %vm993, %v1016, %v1029
  %1031 = vst [vmem:[%s5] sm:$0xff] %v1030
  // Predicated region
  $region22: #{ginnet_forward.1} parent=0 // pred_check
    _
  $region23: #{ginnet_forward.1} parent=0 // pred_check_branch
    %1033 = sbr.rel (0) target = $region25
  $region24: #{ginnet_forward.1} parent=0 // pred_region
    _
  $region25: #{ginnet_forward.1} parent=0 // pred_fallthru
    _
  // Predicated region
  $region26: #{ginnet_forward.1} parent=0 // pred_check
    _
  $region27: #{ginnet_forward.1} parent=0 // pred_check_branch
    %1035 = sbr.rel (0) target = $region29
  $region28: #{ginnet_forward.1} parent=0 // pred_region
    _
  $region29: #{ginnet_forward.1} parent=0 // pred_fallthru
    _

</llo_original>
